<compile_context>
chip_gen: v5e
topology: v5e:2x2
jax: 0.10.0
libtpu: 0.0.40
codegen_flags: <defaults>
</compile_context>

<pallas_src>
import functools

import jax
import jax.numpy as jnp
from jax.experimental import pallas as pl
from jax.experimental.pallas import tpu as pltpu  # noqa: F401  (TPU backend)


# ---------------------------------------------------------------------------
# Fused Pallas kernel: whole forward pass in one call
# ---------------------------------------------------------------------------

def _fused_gnn_kernel(*refs, num_gcn_layers):
    """refs = (a_hat, x, w_enc, b_enc, [w_i, b_i] * L, w_head, b_head, out).

    out = [mu || logstd]  with shape [N, 2 * half].
    """
    a_ref, x_ref = refs[0], refs[1]
    o_ref = refs[-1]

    a = a_ref[...]                                   # [N, N] normalized adjacency

    # Input encoder: Linear + Identity.
    h = jnp.dot(x_ref[...], refs[2][...],
                preferred_element_type=jnp.float32) + refs[3][...]

    # num_gcn_layers x (GCNConv + ReLU); dropout p=0 is a no-op.
    for i in range(num_gcn_layers):
        w = refs[4 + 2 * i][...]
        b = refs[5 + 2 * i][...]
        hw = jnp.dot(h, w, preferred_element_type=jnp.float32)
        h = jnp.maximum(jnp.dot(a, hw, preferred_element_type=jnp.float32) + b,
                        0.0)

    # Merged mu/logstd heads: aggregate once (A@(hW) == (A@h)@W), then a single
    # lane-dense matmul against the concatenated head weights.
    z = jnp.dot(a, h, preferred_element_type=jnp.float32)
    w_head = refs[4 + 2 * num_gcn_layers][...]
    b_head = refs[5 + 2 * num_gcn_layers][...]
    out = jnp.dot(z, w_head, preferred_element_type=jnp.float32) + b_head
    o_ref[...] = out.astype(o_ref.dtype)


def _full_spec(shape):
    # Whole-array block (block_shape == array dims), single grid point.
    return pl.BlockSpec(shape, lambda: (0,) * len(shape))


def gnn_forward_fused(params, x, a_hat):
    """Single pallas_call covering encoder + 4 GCN layers + mu/logstd heads."""
    n = x.shape[0]
    w_enc, b_enc = params["enc"]
    gcn = params["gcn"]
    w_mu, b_mu = params["mu"]
    w_ls, b_ls = params["logstd"]

    # Concatenate the two heads so the output is one lane-dense [N, 32] slab.
    w_head = jnp.concatenate([w_mu, w_ls], axis=1)
    b_head = jnp.concatenate([b_mu, b_ls], axis=0).reshape(1, -1)

    inputs = [a_hat, x, w_enc, b_enc.reshape(1, -1)]
    for (w, b) in gcn:
        inputs += [w, b.reshape(1, -1)]
    inputs += [w_head, b_head]

    out_dim = w_head.shape[1]
    out = pl.pallas_call(
        functools.partial(_fused_gnn_kernel, num_gcn_layers=len(gcn)),
        out_shape=jax.ShapeDtypeStruct((n, out_dim), jnp.float32),
        grid=(),
        in_specs=[_full_spec(a.shape) for a in inputs],
        out_specs=_full_spec((n, out_dim)),
    )(*inputs)

    half = out_dim // 2
    return out[:, :half], out[:, half:]


# ---------------------------------------------------------------------------
# Graph preprocessing (plain-JAX glue)
# ---------------------------------------------------------------------------

def build_gcn_adj(edge_index, num_nodes):
    """Dense A_hat = D^-1/2 (A + I) D^-1/2.

    Edges are scatter-ADDed (duplicates accumulate) and self-loops are added
    only to nodes that lack one, matching PyG add_remaining_self_loops for
    undirected (symmetric) edge sets.
    """
    src = edge_index[0]
    dst = edge_index[1]
    a = jnp.zeros((num_nodes, num_nodes), jnp.float32)
    # message flows src -> dst : row = target, col = source
    a = a.at[dst, src].add(1.0)
    diag = jnp.diagonal(a)
    a = a + jnp.diag(jnp.where(diag == 0.0, 1.0, 0.0))   # remaining self loops
    deg = a.sum(axis=1)
    dinv = jax.lax.rsqrt(jnp.maximum(deg, 1e-12))
    return a * dinv[:, None] * dinv[None, :]


# ---------------------------------------------------------------------------
# Parameters & pure-JAX reference (for validation)
# ---------------------------------------------------------------------------

def init_params(key, in_features, encoder_features, hidden_channels):
    """Deterministic synthetic parameter initialization."""
    params = {}

    def _dense(k, fan_in, fan_out):
        kw, kb = jax.random.split(k)
        scale = 1.0 / jnp.sqrt(jnp.float32(fan_in))
        w = jax.random.uniform(kw, (fan_in, fan_out), jnp.float32, -scale, scale)
        b = jax.random.uniform(kb, (fan_out,), jnp.float32, -scale, scale)
        return w, b

    keys = jax.random.split(key, 3 + len(hidden_channels))
    params["enc"] = _dense(keys[0], in_features, encoder_features)

    dims = [encoder_features] + list(hidden_channels)
    params["gcn"] = []
    for i in range(len(hidden_channels)):
        params["gcn"].append(_dense(keys[1 + i], dims[i], dims[i + 1]))

    last = hidden_channels[-1]
    half = last // 2
    params["mu"] = _dense(keys[-2], last, half)
    params["logstd"] = _dense(keys[-1], last, half)
    return params


def gnn_forward_ref(params, x, a_hat):
    """Pure-JAX reference of the same forward pass."""
    w, b = params["enc"]
    h = x @ w + b
    for (w, b) in params["gcn"]:
        h = jax.nn.relu(a_hat @ (h @ w) + b)
    w_mu, b_mu = params["mu"]
    w_ls, b_ls = params["logstd"]
    mu = a_hat @ (h @ w_mu) + b_mu
    logstd = a_hat @ (h @ w_ls) + b_ls
    return mu, logstd


# ---------------------------------------------------------------------------
# Main
# ---------------------------------------------------------------------------

if __name__ == "__main__":
    N_NODES = 16
    IN_FEATURES = 8
    ENCODER_FEATURES = 128               # module default
    HIDDEN_CHANNELS = [32, 32, 32, 32]   # num_conv_layers = 4

    key = jax.random.PRNGKey(0)
    k_x, k_p = jax.random.split(key)

    # node features [N, F_in]
    x = jax.random.normal(k_x, (N_NODES, IN_FEATURES), jnp.float32)

    # deterministic undirected ring graph -> edge_index [2, 2N]
    idx = jnp.arange(N_NODES)
    nxt = (idx + 1) % N_NODES
    src = jnp.concatenate([idx, nxt])
    dst = jnp.concatenate([nxt, idx])
    edge_index = jnp.stack([src, dst], axis=0)

    a_hat = build_gcn_adj(edge_index, N_NODES)
    params = init_params(k_p, IN_FEATURES, ENCODER_FEATURES, HIDDEN_CHANNELS)

    mu, logstd = jax.jit(gnn_forward_fused)(params, x, a_hat)
    jax.block_until_ready((mu, logstd))

    half = HIDDEN_CHANNELS[-1] // 2
    assert mu.shape == (N_NODES, half)
    assert logstd.shape == (N_NODES, half)
    assert jnp.all(jnp.isfinite(mu)) and jnp.all(jnp.isfinite(logstd))

    # Validate the fused kernel against a pure-JAX reference.
    mu_ref, ls_ref = gnn_forward_ref(params, x, a_hat)
    assert jnp.allclose(mu, mu_ref, rtol=1e-5, atol=1e-5)
    assert jnp.allclose(logstd, ls_ref, rtol=1e-5, atol=1e-5)

    print("KERNEL_OK")
</pallas_src>

<mosaic_0001>
module attributes {stable_mosaic.version = 11 : i64} {
  func.func @_fused_gnn_kernel(%arg0: memref<16x16xf32, #tpu.memory_space<vmem>>, %arg1: memref<16x8xf32, #tpu.memory_space<vmem>>, %arg2: memref<8x128xf32, #tpu.memory_space<vmem>>, %arg3: memref<1x128xf32, #tpu.memory_space<vmem>>, %arg4: memref<128x32xf32, #tpu.memory_space<vmem>>, %arg5: memref<1x32xf32, #tpu.memory_space<vmem>>, %arg6: memref<32x32xf32, #tpu.memory_space<vmem>>, %arg7: memref<1x32xf32, #tpu.memory_space<vmem>>, %arg8: memref<32x32xf32, #tpu.memory_space<vmem>>, %arg9: memref<1x32xf32, #tpu.memory_space<vmem>>, %arg10: memref<32x32xf32, #tpu.memory_space<vmem>>, %arg11: memref<1x32xf32, #tpu.memory_space<vmem>>, %arg12: memref<32x32xf32, #tpu.memory_space<vmem>>, %arg13: memref<1x32xf32, #tpu.memory_space<vmem>>, %arg14: memref<16x32xf32, #tpu.memory_space<vmem>>) attributes {dimension_semantics = [], scalar_prefetch = 0 : i64, scratch_operands = 0 : i64, tpu.core_type = #tpu.core_type<tc>} {
    %c0 = arith.constant 0 : index
    %c0_0 = arith.constant 0 : index
    %0 = vector.load %arg0[%c0, %c0_0] : memref<16x16xf32, #tpu.memory_space<vmem>>, vector<16x16xf32>
    %c0_1 = arith.constant 0 : index
    %c0_2 = arith.constant 0 : index
    %1 = vector.load %arg1[%c0_1, %c0_2] : memref<16x8xf32, #tpu.memory_space<vmem>>, vector<16x8xf32>
    %c0_3 = arith.constant 0 : index
    %c0_4 = arith.constant 0 : index
    %2 = vector.load %arg2[%c0_3, %c0_4] : memref<8x128xf32, #tpu.memory_space<vmem>>, vector<8x128xf32>
    %cst = arith.constant dense<0.000000e+00> : vector<16x128xf32>
    %3 = tpu.matmul %1, %2, %cst {dimension_numbers = #tpu.dot_dimension_numbers<[1], [0], [0], [1], [0, 0, 1, 1], [], []>} : vector<16x8xf32>, vector<8x128xf32>, vector<16x128xf32> -> vector<16x128xf32>
    %c0_5 = arith.constant 0 : index
    %c0_6 = arith.constant 0 : index
    %4 = vector.load %arg3[%c0_5, %c0_6] : memref<1x128xf32, #tpu.memory_space<vmem>>, vector<1x128xf32>
    %5 = vector.broadcast %4 : vector<1x128xf32> to vector<16x128xf32>
    %6 = arith.addf %3, %5 : vector<16x128xf32>
    %c0_7 = arith.constant 0 : index
    %c0_8 = arith.constant 0 : index
    %7 = vector.load %arg4[%c0_7, %c0_8] : memref<128x32xf32, #tpu.memory_space<vmem>>, vector<128x32xf32>
    %c0_9 = arith.constant 0 : index
    %c0_10 = arith.constant 0 : index
    %8 = vector.load %arg5[%c0_9, %c0_10] : memref<1x32xf32, #tpu.memory_space<vmem>>, vector<1x32xf32>
    %cst_11 = arith.constant dense<0.000000e+00> : vector<16x32xf32>
    %9 = tpu.matmul %6, %7, %cst_11 {dimension_numbers = #tpu.dot_dimension_numbers<[1], [0], [0], [1], [0, 0, 1, 1], [], []>} : vector<16x128xf32>, vector<128x32xf32>, vector<16x32xf32> -> vector<16x32xf32>
    %cst_12 = arith.constant dense<0.000000e+00> : vector<16x32xf32>
    %10 = tpu.matmul %0, %9, %cst_12 {dimension_numbers = #tpu.dot_dimension_numbers<[1], [0], [0], [1], [0, 0, 1, 1], [], []>} : vector<16x16xf32>, vector<16x32xf32>, vector<16x32xf32> -> vector<16x32xf32>
    %11 = vector.broadcast %8 : vector<1x32xf32> to vector<16x32xf32>
    %12 = arith.addf %10, %11 : vector<16x32xf32>
    %cst_13 = arith.constant 0.000000e+00 : f32
    %13 = vector.broadcast %cst_13 : f32 to vector<16x32xf32>
    %14 = arith.maximumf %12, %13 : vector<16x32xf32>
    %c0_14 = arith.constant 0 : index
    %c0_15 = arith.constant 0 : index
    %15 = vector.load %arg6[%c0_14, %c0_15] : memref<32x32xf32, #tpu.memory_space<vmem>>, vector<32x32xf32>
    %c0_16 = arith.constant 0 : index
    %c0_17 = arith.constant 0 : index
    %16 = vector.load %arg7[%c0_16, %c0_17] : memref<1x32xf32, #tpu.memory_space<vmem>>, vector<1x32xf32>
    %cst_18 = arith.constant dense<0.000000e+00> : vector<16x32xf32>
    %17 = tpu.matmul %14, %15, %cst_18 {dimension_numbers = #tpu.dot_dimension_numbers<[1], [0], [0], [1], [0, 0, 1, 1], [], []>} : vector<16x32xf32>, vector<32x32xf32>, vector<16x32xf32> -> vector<16x32xf32>
    %cst_19 = arith.constant dense<0.000000e+00> : vector<16x32xf32>
    %18 = tpu.matmul %0, %17, %cst_19 {dimension_numbers = #tpu.dot_dimension_numbers<[1], [0], [0], [1], [0, 0, 1, 1], [], []>} : vector<16x16xf32>, vector<16x32xf32>, vector<16x32xf32> -> vector<16x32xf32>
    %19 = vector.broadcast %16 : vector<1x32xf32> to vector<16x32xf32>
    %20 = arith.addf %18, %19 : vector<16x32xf32>
    %cst_20 = arith.constant 0.000000e+00 : f32
    %21 = vector.broadcast %cst_20 : f32 to vector<16x32xf32>
    %22 = arith.maximumf %20, %21 : vector<16x32xf32>
    %c0_21 = arith.constant 0 : index
    %c0_22 = arith.constant 0 : index
    %23 = vector.load %arg8[%c0_21, %c0_22] : memref<32x32xf32, #tpu.memory_space<vmem>>, vector<32x32xf32>
    %c0_23 = arith.constant 0 : index
    %c0_24 = arith.constant 0 : index
    %24 = vector.load %arg9[%c0_23, %c0_24] : memref<1x32xf32, #tpu.memory_space<vmem>>, vector<1x32xf32>
    %cst_25 = arith.constant dense<0.000000e+00> : vector<16x32xf32>
    %25 = tpu.matmul %22, %23, %cst_25 {dimension_numbers = #tpu.dot_dimension_numbers<[1], [0], [0], [1], [0, 0, 1, 1], [], []>} : vector<16x32xf32>, vector<32x32xf32>, vector<16x32xf32> -> vector<16x32xf32>
    %cst_26 = arith.constant dense<0.000000e+00> : vector<16x32xf32>
    %26 = tpu.matmul %0, %25, %cst_26 {dimension_numbers = #tpu.dot_dimension_numbers<[1], [0], [0], [1], [0, 0, 1, 1], [], []>} : vector<16x16xf32>, vector<16x32xf32>, vector<16x32xf32> -> vector<16x32xf32>
    %27 = vector.broadcast %24 : vector<1x32xf32> to vector<16x32xf32>
    %28 = arith.addf %26, %27 : vector<16x32xf32>
    %cst_27 = arith.constant 0.000000e+00 : f32
    %29 = vector.broadcast %cst_27 : f32 to vector<16x32xf32>
    %30 = arith.maximumf %28, %29 : vector<16x32xf32>
    %c0_28 = arith.constant 0 : index
    %c0_29 = arith.constant 0 : index
    %31 = vector.load %arg10[%c0_28, %c0_29] : memref<32x32xf32, #tpu.memory_space<vmem>>, vector<32x32xf32>
    %c0_30 = arith.constant 0 : index
    %c0_31 = arith.constant 0 : index
    %32 = vector.load %arg11[%c0_30, %c0_31] : memref<1x32xf32, #tpu.memory_space<vmem>>, vector<1x32xf32>
    %cst_32 = arith.constant dense<0.000000e+00> : vector<16x32xf32>
    %33 = tpu.matmul %30, %31, %cst_32 {dimension_numbers = #tpu.dot_dimension_numbers<[1], [0], [0], [1], [0, 0, 1, 1], [], []>} : vector<16x32xf32>, vector<32x32xf32>, vector<16x32xf32> -> vector<16x32xf32>
    %cst_33 = arith.constant dense<0.000000e+00> : vector<16x32xf32>
    %34 = tpu.matmul %0, %33, %cst_33 {dimension_numbers = #tpu.dot_dimension_numbers<[1], [0], [0], [1], [0, 0, 1, 1], [], []>} : vector<16x16xf32>, vector<16x32xf32>, vector<16x32xf32> -> vector<16x32xf32>
    %35 = vector.broadcast %32 : vector<1x32xf32> to vector<16x32xf32>
    %36 = arith.addf %34, %35 : vector<16x32xf32>
    %cst_34 = arith.constant 0.000000e+00 : f32
    %37 = vector.broadcast %cst_34 : f32 to vector<16x32xf32>
    %38 = arith.maximumf %36, %37 : vector<16x32xf32>
    %cst_35 = arith.constant dense<0.000000e+00> : vector<16x32xf32>
    %39 = tpu.matmul %0, %38, %cst_35 {dimension_numbers = #tpu.dot_dimension_numbers<[1], [0], [0], [1], [0, 0, 1, 1], [], []>} : vector<16x16xf32>, vector<16x32xf32>, vector<16x32xf32> -> vector<16x32xf32>
    %c0_36 = arith.constant 0 : index
    %c0_37 = arith.constant 0 : index
    %40 = vector.load %arg12[%c0_36, %c0_37] : memref<32x32xf32, #tpu.memory_space<vmem>>, vector<32x32xf32>
    %c0_38 = arith.constant 0 : index
    %c0_39 = arith.constant 0 : index
    %41 = vector.load %arg13[%c0_38, %c0_39] : memref<1x32xf32, #tpu.memory_space<vmem>>, vector<1x32xf32>
    %cst_40 = arith.constant dense<0.000000e+00> : vector<16x32xf32>
    %42 = tpu.matmul %39, %40, %cst_40 {dimension_numbers = #tpu.dot_dimension_numbers<[1], [0], [0], [1], [0, 0, 1, 1], [], []>} : vector<16x32xf32>, vector<32x32xf32>, vector<16x32xf32> -> vector<16x32xf32>
    %43 = vector.broadcast %41 : vector<1x32xf32> to vector<16x32xf32>
    %44 = arith.addf %42, %43 : vector<16x32xf32>
    %c0_41 = arith.constant 0 : index
    %c0_42 = arith.constant 0 : index
    %45 = vector.load %arg14[%c0_41, %c0_42] : memref<16x32xf32, #tpu.memory_space<vmem>>, vector<16x32xf32>
    tpu.vector_store %arg14[%c0_41, %c0_42], %44 {strides = array<i32>} : memref<16x32xf32, #tpu.memory_space<vmem>>, vector<16x32xf32>,
    return
  }
}

</mosaic_0001>

<llo_original>
// kernel: gnn_forward_fused.1
$region0: #{gnn_forward_fused.1}
  #allocation0 [shape = 'u32[]', space=smem, size = 0x4, offset = 0x4, fixed_abs, tag = 'smem constant byte address 0x4 - core index']
  #allocation1 [shape = 'u32[72,128]{1,0:T(1,128)}', space=vmem, size = 0x9000, scoped, tag = 'internal scratch']
  %s0 = inlined_call_operand.vmem [shape: f32[16,16], index: 0, kind: input, shape index: {}]
  %s1 = inlined_call_operand.vmem [shape: f32[16,8], index: 1, kind: input, shape index: {}]
  %s2 = inlined_call_operand.vmem [shape: f32[8,128], index: 2, kind: input, shape index: {}]
  %s3 = inlined_call_operand.vmem [shape: f32[1,128], index: 3, kind: input, shape index: {}]
  %s4 = inlined_call_operand.vmem [shape: f32[128,32], index: 4, kind: input, shape index: {}]
  %s5 = inlined_call_operand.vmem [shape: f32[1,32], index: 5, kind: input, shape index: {}]
  %s6 = inlined_call_operand.vmem [shape: f32[32,32], index: 6, kind: input, shape index: {}]
  %s7 = inlined_call_operand.vmem [shape: f32[1,32], index: 7, kind: input, shape index: {}]
  %s8 = inlined_call_operand.vmem [shape: f32[32,32], index: 8, kind: input, shape index: {}]
  %s9 = inlined_call_operand.vmem [shape: f32[1,32], index: 9, kind: input, shape index: {}]
  %s10 = inlined_call_operand.vmem [shape: f32[32,32], index: 10, kind: input, shape index: {}]
  %s11 = inlined_call_operand.vmem [shape: f32[1,32], index: 11, kind: input, shape index: {}]
  %s12 = inlined_call_operand.vmem [shape: f32[32,32], index: 12, kind: input, shape index: {}]
  %s13 = inlined_call_operand.vmem [shape: f32[1,32], index: 13, kind: input, shape index: {}]
  %s14 = inlined_call_operand.vmem [shape: f32[16,32], index: 14, kind: output, shape index: {}]
  %s15 = sld [smem:[#allocation0]]
  $region66: #{gnn_forward_fused.1} parent=0
    _
  %s17 = ssub.s32 1, %s15
  %s18 = scalar_select 0, %s17, %s15
  // Predicated region
  $region2: #{gnn_forward_fused.1} parent=0 // pred_check
    _
  $region3: #{gnn_forward_fused.1} parent=0 // pred_check_branch
    %20 = sbr.rel (0) target = $region5
  $region4: #{gnn_forward_fused.1} parent=0 // pred_region
    _
  $region5: #{gnn_forward_fused.1} parent=0 // pred_fallthru
    _
  // Predicated region
  $region6: #{gnn_forward_fused.1} parent=0 // pred_check
    _
  $region7: #{gnn_forward_fused.1} parent=0 // pred_check_branch
    %22 = sbr.rel (0) target = $region9
  $region8: #{gnn_forward_fused.1} parent=0 // pred_region
    _
  $region9: #{gnn_forward_fused.1} parent=0 // pred_fallthru
    _
  // Predicated region
  $region10: #{gnn_forward_fused.1} parent=0 // pred_check
    _
  $region11: #{gnn_forward_fused.1} parent=0 // pred_check_branch
    %24 = sbr.rel (0) target = $region13
  $region12: #{gnn_forward_fused.1} parent=0 // pred_region
    _
  $region13: #{gnn_forward_fused.1} parent=0 // pred_fallthru
    _
  // Predicated region
  $region14: #{gnn_forward_fused.1} parent=0 // pred_check
    _
  $region15: #{gnn_forward_fused.1} parent=0 // pred_check_branch
    %26 = sbr.rel (0) target = $region17
  $region16: #{gnn_forward_fused.1} parent=0 // pred_region
    _
  $region17: #{gnn_forward_fused.1} parent=0 // pred_fallthru
    _
  // Predicated region
  $region18: #{gnn_forward_fused.1} parent=0 // pred_check
    _
  $region19: #{gnn_forward_fused.1} parent=0 // pred_check_branch
    %28 = sbr.rel (0) target = $region21
  $region20: #{gnn_forward_fused.1} parent=0 // pred_region
    _
  $region21: #{gnn_forward_fused.1} parent=0 // pred_fallthru
    _
  // Predicated region
  $region22: #{gnn_forward_fused.1} parent=0 // pred_check
    _
  $region23: #{gnn_forward_fused.1} parent=0 // pred_check_branch
    %30 = sbr.rel (0) target = $region25
  $region24: #{gnn_forward_fused.1} parent=0 // pred_region
    _
  $region25: #{gnn_forward_fused.1} parent=0 // pred_fallthru
    _
  // Predicated region
  $region26: #{gnn_forward_fused.1} parent=0 // pred_check
    _
  $region27: #{gnn_forward_fused.1} parent=0 // pred_check_branch
    %32 = sbr.rel (0) target = $region29
  $region28: #{gnn_forward_fused.1} parent=0 // pred_region
    _
  $region29: #{gnn_forward_fused.1} parent=0 // pred_fallthru
    _
  // Predicated region
  $region30: #{gnn_forward_fused.1} parent=0 // pred_check
    _
  $region31: #{gnn_forward_fused.1} parent=0 // pred_check_branch
    %34 = sbr.rel (0) target = $region33
  $region32: #{gnn_forward_fused.1} parent=0 // pred_region
    _
  $region33: #{gnn_forward_fused.1} parent=0 // pred_fallthru
    _
  // Predicated region
  $region34: #{gnn_forward_fused.1} parent=0 // pred_check
    _
  $region35: #{gnn_forward_fused.1} parent=0 // pred_check_branch
    %36 = sbr.rel (0) target = $region37
  $region36: #{gnn_forward_fused.1} parent=0 // pred_region
    _
  $region37: #{gnn_forward_fused.1} parent=0 // pred_fallthru
    _
  // Predicated region
  $region38: #{gnn_forward_fused.1} parent=0 // pred_check
    _
  $region39: #{gnn_forward_fused.1} parent=0 // pred_check_branch
    %38 = sbr.rel (0) target = $region41
  $region40: #{gnn_forward_fused.1} parent=0 // pred_region
    _
  $region41: #{gnn_forward_fused.1} parent=0 // pred_fallthru
    _
  // Predicated region
  $region42: #{gnn_forward_fused.1} parent=0 // pred_check
    _
  $region43: #{gnn_forward_fused.1} parent=0 // pred_check_branch
    %40 = sbr.rel (0) target = $region45
  $region44: #{gnn_forward_fused.1} parent=0 // pred_region
    _
  $region45: #{gnn_forward_fused.1} parent=0 // pred_fallthru
    _
  // Predicated region
  $region46: #{gnn_forward_fused.1} parent=0 // pred_check
    _
  $region47: #{gnn_forward_fused.1} parent=0 // pred_check_branch
    %42 = sbr.rel (0) target = $region49
  $region48: #{gnn_forward_fused.1} parent=0 // pred_region
    _
  $region49: #{gnn_forward_fused.1} parent=0 // pred_fallthru
    _
  // Predicated region
  $region50: #{gnn_forward_fused.1} parent=0 // pred_check
    _
  $region51: #{gnn_forward_fused.1} parent=0 // pred_check_branch
    %44 = sbr.rel (0) target = $region53
  $region52: #{gnn_forward_fused.1} parent=0 // pred_region
    _
  $region53: #{gnn_forward_fused.1} parent=0 // pred_fallthru
    _
  // Predicated region
  $region54: #{gnn_forward_fused.1} parent=0 // pred_check
    _
  $region55: #{gnn_forward_fused.1} parent=0 // pred_check_branch
    %46 = sbr.rel (0) target = $region57
  $region56: #{gnn_forward_fused.1} parent=0 // pred_region
    _
  $region57: #{gnn_forward_fused.1} parent=0 // pred_fallthru
    _
  %v47 = vld [vmem:[%s0] sm:$0xff]
  %v48 = vld [vmem:[%s0 + $0x8] sm:$0xff]
  %v49 = vld [vmem:[%s1] sm:$0xff]
  %v50 = vld [vmem:[%s1 + $0x8] sm:$0xff]
  %v51 = vld [vmem:[%s2] sm:$0xff]
  %v52 = vld [vmem:[%s3] sm:$0x1]
  %v54 = vperm.slane %v52, 0
  %vm56 = vcmask 64512
  %v58 = vsel %vm56, %v49, 0
  %v61 = vsel %vm56, %v50, 0
  %63 = vmatpush.msra.mxu0 0.0
  %64 = vmatpush.msra.mxu0 0.0
  %65 = vmatpush.msra.mxu0 0.0
  %66 = vmatpush.msra.mxu0 0.0
  %67 = vmatpush.msra.mxu0 0.0
  %68 = vmatpush.msra.mxu0 0.0
  %69 = vmatpush.msra.mxu0 0.0
  %70 = vmatpush.msra.mxu0 0.0
  %71 = vmatpush.msra.mxu0 0.0
  %72 = vmatpush.msra.mxu0 0.0
  %73 = vmatpush.msra.mxu0 0.0
  %74 = vmatpush.msra.mxu0 0.0
  %75 = vmatpush.msra.mxu0 0.0
  %76 = vmatpush.msra.mxu0 0.0
  %77 = vmatpush.msra.mxu0 0.0
  %78 = vmatpush.msra.mxu0 %v51
  %79 = vmatmul.f32.gmra.mxu0 %v58
  %v80 = vpop.f32.mrf.mxu0
  %v81 = vadd.f32 %v54, %v80
  %82 = vmatmul.f32.gmra.mxu0 %v61
  %v83 = vpop.f32.mrf.mxu0
  %v84 = vadd.f32 %v54, %v83
  %85 = vdwg.mxu0
  %v86 = vld [vmem:[%s4] sm:$0xff]
  %v87 = vld [vmem:[%s4 + $0x8] sm:$0xff]
  %v88 = vld [vmem:[%s4 + $0x10] sm:$0xff]
  %v89 = vld [vmem:[%s4 + $0x18] sm:$0xff]
  %v90 = vld [vmem:[%s4 + $0x20] sm:$0xff]
  %v91 = vld [vmem:[%s4 + $0x28] sm:$0xff]
  %v92 = vld [vmem:[%s4 + $0x30] sm:$0xff]
  %v93 = vld [vmem:[%s4 + $0x38] sm:$0xff]
  %v94 = vld [vmem:[%s4 + $0x40] sm:$0xff]
  %v95 = vld [vmem:[%s4 + $0x48] sm:$0xff]
  %v96 = vld [vmem:[%s4 + $0x50] sm:$0xff]
  %v97 = vld [vmem:[%s4 + $0x58] sm:$0xff]
  %v98 = vld [vmem:[%s4 + $0x60] sm:$0xff]
  %v99 = vld [vmem:[%s4 + $0x68] sm:$0xff]
  %v100 = vld [vmem:[%s4 + $0x70] sm:$0xff]
  %v101 = vld [vmem:[%s4 + $0x78] sm:$0xff]
  %v102 = vld [vmem:[%s5] sm:$0x1]
  %103 = vmatpush.msra.mxu0 %v101
  %104 = vmatpush.msra.mxu0 %v100
  %105 = vmatpush.msra.mxu0 %v99
  %106 = vmatpush.msra.mxu0 %v98
  %107 = vmatpush.msra.mxu0 %v97
  %108 = vmatpush.msra.mxu0 %v96
  %109 = vmatpush.msra.mxu0 %v95
  %110 = vmatpush.msra.mxu0 %v94
  %111 = vmatpush.msra.mxu0 %v93
  %112 = vmatpush.msra.mxu0 %v92
  %113 = vmatpush.msra.mxu0 %v91
  %114 = vmatpush.msra.mxu0 %v90
  %115 = vmatpush.msra.mxu0 %v89
  %116 = vmatpush.msra.mxu0 %v88
  %117 = vmatpush.msra.mxu0 %v87
  %118 = vmatpush.msra.mxu0 %v86
  %119 = vmatmul.f32.gmra.mxu0 %v81
  %v120 = vpop.f32.mrf.mxu0
  %v121 = vadd.f32 0.0, %v120
  %122 = vmatmul.f32.gmra.mxu0 %v84
  %v123 = vpop.f32.mrf.mxu0
  %v124 = vadd.f32 0.0, %v123
  %125 = vdwg.mxu0
  %v127 = vperm.slane %v102, 0
  %vm129 = vcmask 130048
  %v131 = vsel %vm129, %v47, 0
  %v134 = vsel %vm129, %v48, 0
  %136 = vmatpush.msra.mxu0 0.0
  %137 = vmatpush.msra.mxu0 0.0
  %138 = vmatpush.msra.mxu0 0.0
  %139 = vmatpush.msra.mxu0 0.0
  %140 = vmatpush.msra.mxu0 0.0
  %141 = vmatpush.msra.mxu0 0.0
  %142 = vmatpush.msra.mxu0 0.0
  %143 = vmatpush.msra.mxu0 0.0
  %144 = vmatpush.msra.mxu0 0.0
  %145 = vmatpush.msra.mxu0 0.0
  %146 = vmatpush.msra.mxu0 0.0
  %147 = vmatpush.msra.mxu0 0.0
  %148 = vmatpush.msra.mxu0 0.0
  %149 = vmatpush.msra.mxu0 0.0
  %150 = vmatpush.msra.mxu0 %v124
  %151 = vmatpush.msra.mxu0 %v121
  %152 = vmatmul.f32.gmra.mxu0 %v131
  %v153 = vpop.f32.mrf.mxu0
  %v154 = vadd.f32 %v127, %v153
  %155 = vmatmul.f32.gmra.mxu0 %v134
  %v156 = vpop.f32.mrf.mxu0
  %v157 = vadd.f32 %v127, %v156
  %158 = vdwg.mxu0
  %v159 = vmax.f32 %v154, 0.0
  %v160 = vmax.f32 %v157, 0.0
  %v161 = vld [vmem:[%s6] sm:$0xff]
  %v162 = vld [vmem:[%s6 + $0x8] sm:$0xff]
  %v163 = vld [vmem:[%s6 + $0x10] sm:$0xff]
  %v164 = vld [vmem:[%s6 + $0x18] sm:$0xff]
  %v165 = vld [vmem:[%s7] sm:$0x1]
  %vm166 = vcmask 261120
  %v168 = vsel %vm166, %v159, 0
  %v171 = vsel %vm166, %v160, 0
  %173 = vmatpush.msra.mxu0 0.0
  %174 = vmatpush.msra.mxu0 0.0
  %175 = vmatpush.msra.mxu0 0.0
  %176 = vmatpush.msra.mxu0 0.0
  %177 = vmatpush.msra.mxu0 0.0
  %178 = vmatpush.msra.mxu0 0.0
  %179 = vmatpush.msra.mxu0 0.0
  %180 = vmatpush.msra.mxu0 0.0
  %181 = vmatpush.msra.mxu0 0.0
  %182 = vmatpush.msra.mxu0 0.0
  %183 = vmatpush.msra.mxu0 0.0
  %184 = vmatpush.msra.mxu0 0.0
  %185 = vmatpush.msra.mxu0 %v164
  %186 = vmatpush.msra.mxu0 %v163
  %187 = vmatpush.msra.mxu0 %v162
  %188 = vmatpush.msra.mxu0 %v161
  %189 = vmatmul.f32.gmra.mxu0 %v168
  %v190 = vpop.f32.mrf.mxu0
  %v191 = vadd.f32 0.0, %v190
  %192 = vmatmul.f32.gmra.mxu0 %v171
  %v193 = vpop.f32.mrf.mxu0
  %v194 = vadd.f32 0.0, %v193
  %195 = vdwg.mxu0
  %v197 = vperm.slane %v165, 0
  %199 = vmatpush.msra.mxu0 0.0
  %200 = vmatpush.msra.mxu0 0.0
  %201 = vmatpush.msra.mxu0 0.0
  %202 = vmatpush.msra.mxu0 0.0
  %203 = vmatpush.msra.mxu0 0.0
  %204 = vmatpush.msra.mxu0 0.0
  %205 = vmatpush.msra.mxu0 0.0
  %206 = vmatpush.msra.mxu0 0.0
  %207 = vmatpush.msra.mxu0 0.0
  %208 = vmatpush.msra.mxu0 0.0
  %209 = vmatpush.msra.mxu0 0.0
  %210 = vmatpush.msra.mxu0 0.0
  %211 = vmatpush.msra.mxu0 0.0
  %212 = vmatpush.msra.mxu0 0.0
  %213 = vmatpush.msra.mxu0 %v194
  %214 = vmatpush.msra.mxu0 %v191
  %215 = vmatmul.f32.gmra.mxu0 %v131
  %v216 = vpop.f32.mrf.mxu0
  %v217 = vadd.f32 %v197, %v216
  %218 = vmatmul.f32.gmra.mxu0 %v134
  %v219 = vpop.f32.mrf.mxu0
  %v220 = vadd.f32 %v197, %v219
  %221 = vdwg.mxu0
  %v222 = vmax.f32 %v217, 0.0
  %v223 = vmax.f32 %v220, 0.0
  %v224 = vld [vmem:[%s8] sm:$0xff]
  %v225 = vld [vmem:[%s8 + $0x8] sm:$0xff]
  %v226 = vld [vmem:[%s8 + $0x10] sm:$0xff]
  %v227 = vld [vmem:[%s8 + $0x18] sm:$0xff]
  %v228 = vld [vmem:[%s9] sm:$0x1]
  %v230 = vsel %vm166, %v222, 0
  %v233 = vsel %vm166, %v223, 0
  %235 = vmatpush.msra.mxu0 0.0
  %236 = vmatpush.msra.mxu0 0.0
  %237 = vmatpush.msra.mxu0 0.0
  %238 = vmatpush.msra.mxu0 0.0
  %239 = vmatpush.msra.mxu0 0.0
  %240 = vmatpush.msra.mxu0 0.0
  %241 = vmatpush.msra.mxu0 0.0
  %242 = vmatpush.msra.mxu0 0.0
  %243 = vmatpush.msra.mxu0 0.0
  %244 = vmatpush.msra.mxu0 0.0
  %245 = vmatpush.msra.mxu0 0.0
  %246 = vmatpush.msra.mxu0 0.0
  %247 = vmatpush.msra.mxu0 %v227
  %248 = vmatpush.msra.mxu0 %v226
  %249 = vmatpush.msra.mxu0 %v225
  %250 = vmatpush.msra.mxu0 %v224
  %251 = vmatmul.f32.gmra.mxu0 %v230
  %v252 = vpop.f32.mrf.mxu0
  %v253 = vadd.f32 0.0, %v252
  %254 = vmatmul.f32.gmra.mxu0 %v233
  %v255 = vpop.f32.mrf.mxu0
  %v256 = vadd.f32 0.0, %v255
  %257 = vdwg.mxu0
  %v259 = vperm.slane %v228, 0
  %261 = vmatpush.msra.mxu0 0.0
  %262 = vmatpush.msra.mxu0 0.0
  %263 = vmatpush.msra.mxu0 0.0
  %264 = vmatpush.msra.mxu0 0.0
  %265 = vmatpush.msra.mxu0 0.0
  %266 = vmatpush.msra.mxu0 0.0
  %267 = vmatpush.msra.mxu0 0.0
  %268 = vmatpush.msra.mxu0 0.0
  %269 = vmatpush.msra.mxu0 0.0
  %270 = vmatpush.msra.mxu0 0.0
  %271 = vmatpush.msra.mxu0 0.0
  %272 = vmatpush.msra.mxu0 0.0
  %273 = vmatpush.msra.mxu0 0.0
  %274 = vmatpush.msra.mxu0 0.0
  %275 = vmatpush.msra.mxu0 %v256
  %276 = vmatpush.msra.mxu0 %v253
  %277 = vmatmul.f32.gmra.mxu0 %v131
  %v278 = vpop.f32.mrf.mxu0
  %v279 = vadd.f32 %v259, %v278
  %280 = vmatmul.f32.gmra.mxu0 %v134
  %v281 = vpop.f32.mrf.mxu0
  %v282 = vadd.f32 %v259, %v281
  %283 = vdwg.mxu0
  %v284 = vmax.f32 %v279, 0.0
  %v285 = vmax.f32 %v282, 0.0
  %v286 = vld [vmem:[%s10] sm:$0xff]
  %v287 = vld [vmem:[%s10 + $0x8] sm:$0xff]
  %v288 = vld [vmem:[%s10 + $0x10] sm:$0xff]
  %v289 = vld [vmem:[%s10 + $0x18] sm:$0xff]
  %v290 = vld [vmem:[%s11] sm:$0x1]
  %v292 = vsel %vm166, %v284, 0
  %v295 = vsel %vm166, %v285, 0
  %297 = vmatpush.msra.mxu0 0.0
  %298 = vmatpush.msra.mxu0 0.0
  %299 = vmatpush.msra.mxu0 0.0
  %300 = vmatpush.msra.mxu0 0.0
  %301 = vmatpush.msra.mxu0 0.0
  %302 = vmatpush.msra.mxu0 0.0
  %303 = vmatpush.msra.mxu0 0.0
  %304 = vmatpush.msra.mxu0 0.0
  %305 = vmatpush.msra.mxu0 0.0
  %306 = vmatpush.msra.mxu0 0.0
  %307 = vmatpush.msra.mxu0 0.0
  %308 = vmatpush.msra.mxu0 0.0
  %309 = vmatpush.msra.mxu0 %v289
  %310 = vmatpush.msra.mxu0 %v288
  %311 = vmatpush.msra.mxu0 %v287
  %312 = vmatpush.msra.mxu0 %v286
  %313 = vmatmul.f32.gmra.mxu0 %v292
  %v314 = vpop.f32.mrf.mxu0
  %v315 = vadd.f32 0.0, %v314
  %316 = vmatmul.f32.gmra.mxu0 %v295
  %v317 = vpop.f32.mrf.mxu0
  %v318 = vadd.f32 0.0, %v317
  %319 = vdwg.mxu0
  %v321 = vperm.slane %v290, 0
  %323 = vmatpush.msra.mxu0 0.0
  %324 = vmatpush.msra.mxu0 0.0
  %325 = vmatpush.msra.mxu0 0.0
  %326 = vmatpush.msra.mxu0 0.0
  %327 = vmatpush.msra.mxu0 0.0
  %328 = vmatpush.msra.mxu0 0.0
  %329 = vmatpush.msra.mxu0 0.0
  %330 = vmatpush.msra.mxu0 0.0
  %331 = vmatpush.msra.mxu0 0.0
  %332 = vmatpush.msra.mxu0 0.0
  %333 = vmatpush.msra.mxu0 0.0
  %334 = vmatpush.msra.mxu0 0.0
  %335 = vmatpush.msra.mxu0 0.0
  %336 = vmatpush.msra.mxu0 0.0
  %337 = vmatpush.msra.mxu0 %v318
  %338 = vmatpush.msra.mxu0 %v315
  %339 = vmatmul.f32.gmra.mxu0 %v131
  %v340 = vpop.f32.mrf.mxu0
  %v341 = vadd.f32 %v321, %v340
  %342 = vmatmul.f32.gmra.mxu0 %v134
  %v343 = vpop.f32.mrf.mxu0
  %v344 = vadd.f32 %v321, %v343
  %345 = vdwg.mxu0
  %v346 = vmax.f32 %v341, 0.0
  %v347 = vmax.f32 %v344, 0.0
  %348 = vmatpush.msra.mxu0 0.0
  %349 = vmatpush.msra.mxu0 0.0
  %350 = vmatpush.msra.mxu0 0.0
  %351 = vmatpush.msra.mxu0 0.0
  %352 = vmatpush.msra.mxu0 0.0
  %353 = vmatpush.msra.mxu0 0.0
  %354 = vmatpush.msra.mxu0 0.0
  %355 = vmatpush.msra.mxu0 0.0
  %356 = vmatpush.msra.mxu0 0.0
  %357 = vmatpush.msra.mxu0 0.0
  %358 = vmatpush.msra.mxu0 0.0
  %359 = vmatpush.msra.mxu0 0.0
  %360 = vmatpush.msra.mxu0 0.0
  %361 = vmatpush.msra.mxu0 0.0
  %362 = vmatpush.msra.mxu0 %v347
  %363 = vmatpush.msra.mxu0 %v346
  %364 = vmatmul.f32.gmra.mxu0 %v131
  %v365 = vpop.f32.mrf.mxu0
  %v366 = vadd.f32 0.0, %v365
  %367 = vmatmul.f32.gmra.mxu0 %v134
  %v368 = vpop.f32.mrf.mxu0
  %v369 = vadd.f32 0.0, %v368
  %370 = vdwg.mxu0
  %v371 = vld [vmem:[%s12] sm:$0xff]
  %v372 = vld [vmem:[%s12 + $0x8] sm:$0xff]
  %v373 = vld [vmem:[%s12 + $0x10] sm:$0xff]
  %v374 = vld [vmem:[%s12 + $0x18] sm:$0xff]
  %v375 = vld [vmem:[%s13] sm:$0x1]
  %v377 = vperm.slane %v375, 0
  %v380 = vsel %vm166, %v366, 0
  %v383 = vsel %vm166, %v369, 0
  %385 = vmatpush.msra.mxu0 0.0
  %386 = vmatpush.msra.mxu0 0.0
  %387 = vmatpush.msra.mxu0 0.0
  %388 = vmatpush.msra.mxu0 0.0
  %389 = vmatpush.msra.mxu0 0.0
  %390 = vmatpush.msra.mxu0 0.0
  %391 = vmatpush.msra.mxu0 0.0
  %392 = vmatpush.msra.mxu0 0.0
  %393 = vmatpush.msra.mxu0 0.0
  %394 = vmatpush.msra.mxu0 0.0
  %395 = vmatpush.msra.mxu0 0.0
  %396 = vmatpush.msra.mxu0 0.0
  %397 = vmatpush.msra.mxu0 %v374
  %398 = vmatpush.msra.mxu0 %v373
  %399 = vmatpush.msra.mxu0 %v372
  %400 = vmatpush.msra.mxu0 %v371
  %401 = vmatmul.f32.gmra.mxu0 %v380
  %v402 = vpop.f32.mrf.mxu0
  %v403 = vadd.f32 %v377, %v402
  %404 = vmatmul.f32.gmra.mxu0 %v383
  %v405 = vpop.f32.mrf.mxu0
  %v406 = vadd.f32 %v377, %v405
  %407 = vdwg.mxu0
  %408 = vst.msk [vmem:[%s14] sm:$0xff] %vm166, %v403
  %409 = vst.msk [vmem:[%s14 + $0x8] sm:$0xff] %vm166, %v406
  // Predicated region
  $region58: #{gnn_forward_fused.1} parent=0 // pred_check
    _
  $region59: #{gnn_forward_fused.1} parent=0 // pred_check_branch
    %411 = sbr.rel (0) target = $region61
  $region60: #{gnn_forward_fused.1} parent=0 // pred_region
    _
  $region61: #{gnn_forward_fused.1} parent=0 // pred_fallthru
    _
  // Predicated region
  $region62: #{gnn_forward_fused.1} parent=0 // pred_check
    _
  $region63: #{gnn_forward_fused.1} parent=0 // pred_check_branch
    %413 = sbr.rel (0) target = $region65
  $region64: #{gnn_forward_fused.1} parent=0 // pred_region
    _
  $region65: #{gnn_forward_fused.1} parent=0 // pred_fallthru
    _

</llo_original>
